<compile_context>
chip_gen: v7x
topology: tpu7x:2x2x1
jax: 0.10.0
libtpu: 0.0.40
codegen_flags: <defaults>
</compile_context>

<pallas_src>
import functools

import jax
import jax.numpy as jnp
from jax.experimental import pallas as pl
from jax.experimental.pallas import tpu as pltpu


def _num_tensorcores_per_chip():
    """v7x has 2 TensorCores per chip (a 'parallel' grid split pays off);
    v5e/v6e have 1 (a >1 grid there only adds per-step overhead)."""
    try:
        kind = jax.devices()[0].device_kind.lower()
        return 2 if "7" in kind else 1
    except Exception:
        return 1


def _lstm_kernel(x_ref, wih_ref, whh_ref, b_ref, out_ref, *, seq_len, nb, hid_dim):
    """Full-sequence single-layer LSTM for one core's slice of the LSTM batch.

    x_ref   : (C, S*Nb)   inputs, transposed + time-major: column t*Nb + m
    wih_ref : (4H, C)     W_ih, native PyTorch layout
    whh_ref : (4H, H)     W_hh, native PyTorch layout
    b_ref   : (4H, 1)     b_ih + b_hh
    out_ref : (S, H, Nb)  hidden state per step (transposed; fixed up in the wrapper)
    """
    S, Nb, H = seq_len, nb, hid_dim

    def sigmoid(v):
        # One EUP op instead of exp + divide; shortens the serially-dependent chain.
        return 0.5 * jnp.tanh(0.5 * v) + 0.5

    # ---- Prologue (fully parallel): hoisted input projection, one MXU matmul. ----
    # xp[:, t*Nb + m] = W_ih @ x_t[m] + (b_ih + b_hh)
    xp = jnp.dot(wih_ref[...], x_ref[...],
                 preferred_element_type=jnp.float32) + b_ref[...]     # (4H, S*Nb)

    # Pre-split per-step projections with *static* slices: they depend only on the
    # prologue, so the scheduler lifts them off the serial recurrence chain, and no
    # VMEM scratch store / masked re-loads are needed.
    xp_steps = [xp[:, t * Nb:(t + 1) * Nb] for t in range(S)]         # each (4H, Nb)

    whh = whh_ref[...]                                                # (4H, H), loop-invariant

    # ---- Serial recurrence, statically unrolled (S == torch batch dim, tiny). ----
    # Gate layout (4H, Nb): i/f/g/o extraction below is a sublane slice at multiples
    # of H — free vreg selection, no lane shuffles inside the serial loop.
    h = jnp.zeros((H, Nb), jnp.float32)
    c = jnp.zeros((H, Nb), jnp.float32)
    for t in range(S):
        gates = xp_steps[t] + jnp.dot(whh, h, preferred_element_type=jnp.float32)
        i_g = sigmoid(gates[0 * H:1 * H, :])
        f_g = sigmoid(gates[1 * H:2 * H, :])
        g_g = jnp.tanh(gates[2 * H:3 * H, :])
        o_g = sigmoid(gates[3 * H:4 * H, :])
        c = f_g * c + i_g * g_g
        h = o_g * jnp.tanh(c)
        out_ref[t] = h                     # stays in VMEM; written back once at the end


def lstm_pallas(x_seq, w_ih, w_hh, b_ih, b_hh):
    """x_seq: (S, N, C) float32 — PyTorch batch_first=False LSTM layout.
    Weights in native PyTorch layout: w_ih (4H, C), w_hh (4H, H), b_ih/b_hh (4H,).
    Returns out (S, N, H) float32."""
    S, N, C = x_seq.shape
    four_h, H = w_hh.shape
    assert four_h == 4 * H

    # TODO(synk): if S (== torch batch) ever becomes large, replace the static unroll
    # with lax.fori_loop / a pipelined grid over S to bound code size.

    G = _num_tensorcores_per_chip()
    if N % G != 0:
        G = 1
    Nb = N // G

    w_ih = jnp.asarray(w_ih, jnp.float32)                         # (4H, C)
    w_hh = jnp.asarray(w_hh, jnp.float32)                         # (4H, H)
    bias = (jnp.asarray(b_ih, jnp.float32)
            + jnp.asarray(b_hh, jnp.float32)).reshape(4 * H, 1)   # (4H, 1)

    # Per-core, time-major, feature-transposed input (pure XLA layout plumbing):
    #   xg[g, c, t*Nb + m] = x_seq[t, g*Nb + m, c]
    xg = jnp.asarray(x_seq, jnp.float32).reshape(S, G, Nb, C)
    xg = jnp.transpose(xg, (1, 3, 0, 2)).reshape(G, C, S * Nb)

    kernel = functools.partial(_lstm_kernel, seq_len=S, nb=Nb, hid_dim=H)

    # Footprint is a few tens of KiB — far below every chip's VMEM limit. If the
    # config scales (features_len / hid_dim / batch), switch to tiled BlockSpecs over
    # the LSTM-batch axis and raise vmem_limit_bytes (v7x physical VMEM is 64 MiB).
    # If many independent instances are evaluated, fold them into this same call by
    # extending the leading grid axis — the weight BlockSpecs below have constant
    # index_maps, so the weights are fetched once and stay resident.
    outg = pl.pallas_call(
        kernel,
        grid=(G,),
        out_shape=jax.ShapeDtypeStruct((G, S, H, Nb), jnp.float32),
        in_specs=[
            pl.BlockSpec((None, C, S * Nb), lambda g: (g, 0, 0)),   # per-core inputs
            pl.BlockSpec((4 * H, C), lambda g: (0, 0)),             # weights: resident
            pl.BlockSpec((4 * H, H), lambda g: (0, 0)),
            pl.BlockSpec((4 * H, 1), lambda g: (0, 0)),
        ],
        out_specs=pl.BlockSpec((None, S, H, Nb), lambda g: (g, 0, 0, 0)),
        compiler_params=pltpu.CompilerParams(dimension_semantics=("parallel",)),
    )(xg, w_ih, w_hh, bias)

    # outg[g, t, h, m] = h_t[h, g*Nb + m]  ->  (S, N, H)   (XLA-side transpose, tiny)
    out = jnp.transpose(outg, (1, 0, 3, 2)).reshape(S, N, H)
    return out


def temporal_imputer_forward(x, params):
    """Matches Temporal_Imputer.forward exactly.

    x: (B, num_channels, features_len) float32
    returns: (B, num_channels, features_len * hid_dim // num_channels)
    """
    B, C, L = x.shape
    H = params["w_hh"].shape[1]
    assert (L * H) % C == 0, "out.view(B, C, -1) requires (L*H) % C == 0"
    x_seq = x.reshape(B, -1, C)                        # == torch x.view(B, -1, C)
    out = lstm_pallas(x_seq, params["w_ih"], params["w_hh"],
                      params["b_ih"], params["b_hh"])  # (B, L, H)
    return out.reshape(B, C, -1)                       # == torch out.view(B, C, -1)


def _reference_lstm(x_seq, w_ih, w_hh, b_ih, b_hh):
    """Pure-JAX reference of PyTorch nn.LSTM (single layer, unidirectional)."""
    S, N, C = x_seq.shape
    H = w_hh.shape[1]
    hp = jax.lax.Precision.HIGHEST
    h = jnp.zeros((N, H), jnp.float32)
    c = jnp.zeros((N, H), jnp.float32)
    outs = []
    for t in range(S):
        gates = (jnp.dot(x_seq[t], w_ih.T, precision=hp)
                 + jnp.dot(h, w_hh.T, precision=hp) + b_ih + b_hh)
        i = jax.nn.sigmoid(gates[:, 0 * H:1 * H])
        f = jax.nn.sigmoid(gates[:, 1 * H:2 * H])
        g = jnp.tanh(gates[:, 2 * H:3 * H])
        o = jax.nn.sigmoid(gates[:, 3 * H:4 * H])
        c = f * c + i * g
        h = o * jnp.tanh(c)
        outs.append(h)
    return jnp.stack(outs, axis=0)


if __name__ == "__main__":
    # Small config consistent with the module:
    #   configs.final_out_channels = num_channels = 16
    #   configs.features_len       = seq_length   = 16
    #   configs.AR_hid_dim         = hid_dim      = 16
    B, C, L, H = 4, 16, 16, 16

    key = jax.random.PRNGKey(0)
    k_x, k_wih, k_whh, k_bih, k_bhh = jax.random.split(key, 5)

    x = jax.random.normal(k_x, (B, C, L), dtype=jnp.float32)

    # Deterministic PyTorch-style init: U(-1/sqrt(H), 1/sqrt(H)).
    bound = 1.0 / (H ** 0.5)
    params = {
        "w_ih": jax.random.uniform(k_wih, (4 * H, C), jnp.float32, -bound, bound),
        "w_hh": jax.random.uniform(k_whh, (4 * H, H), jnp.float32, -bound, bound),
        "b_ih": jax.random.uniform(k_bih, (4 * H,), jnp.float32, -bound, bound),
        "b_hh": jax.random.uniform(k_bhh, (4 * H,), jnp.float32, -bound, bound),
    }

    fwd = jax.jit(temporal_imputer_forward)
    out = jax.block_until_ready(fwd(x, params))
    assert out.shape == (B, C, L * H // C), out.shape

    # Sanity check vs. pure-JAX LSTM reference.  Tolerance is sized to absorb MXU
    # f32 multi-pass accumulation-order and sigmoid-via-tanh formulation differences
    # against the HIGHEST-precision XLA reference; semantic bugs (gate order, reshape
    # layout, init state) would show up as O(0.1)+ errors.
    ref = _reference_lstm(x.reshape(B, -1, C), params["w_ih"], params["w_hh"],
                          params["b_ih"], params["b_hh"]).reshape(B, C, -1)
    assert jnp.allclose(out, ref, atol=1e-3, rtol=1e-3), float(jnp.max(jnp.abs(out - ref)))

    print("KERNEL_OK")
</pallas_src>

<mosaic_0001>
module attributes {stable_mosaic.version = 11 : i64} {
  func.func @_lstm_kernel(%arg0: i32, %arg1: memref<1x16x64xf32, #tpu.memory_space<vmem>>, %arg2: memref<64x16xf32, #tpu.memory_space<vmem>>, %arg3: memref<64x16xf32, #tpu.memory_space<vmem>>, %arg4: memref<64x1xf32, #tpu.memory_space<vmem>>, %arg5: memref<1x4x16x16xf32, #tpu.memory_space<vmem>>) attributes {dimension_semantics = [#tpu.dimension_semantics<parallel>], iteration_bounds = array<i64: 1>, scalar_prefetch = 0 : i64, scratch_operands = 0 : i64, tpu.core_type = #tpu.core_type<tc>, window_params = [{transform_indices = @transform_0, window_bounds = array<i64: 1, 16, 64>}, {pipeline_mode = #tpu.pipeline_mode<synchronous>, transform_indices = @transform_1, window_bounds = array<i64: 64, 16>}, {pipeline_mode = #tpu.pipeline_mode<synchronous>, transform_indices = @transform_2, window_bounds = array<i64: 64, 16>}, {pipeline_mode = #tpu.pipeline_mode<synchronous>, transform_indices = @transform_3, window_bounds = array<i64: 64, 1>}, {transform_indices = @transform_4, window_bounds = array<i64: 1, 4, 16, 16>}]} {
    %c0 = arith.constant 0 : index
    %c0_0 = arith.constant 0 : index
    %0 = vector.load %arg2[%c0, %c0_0] : memref<64x16xf32, #tpu.memory_space<vmem>>, vector<64x16xf32>
    %c0_1 = arith.constant 0 : index
    %c0_2 = arith.constant 0 : index
    %c0_3 = arith.constant 0 : index
    %1 = vector.load %arg1[%c0_1, %c0_2, %c0_3] : memref<1x16x64xf32, #tpu.memory_space<vmem>>, vector<1x16x64xf32>
    %2 = vector.shape_cast %1 : vector<1x16x64xf32> to vector<16x64xf32>
    %cst = arith.constant dense<0.000000e+00> : vector<64x64xf32>
    %3 = tpu.matmul %0, %2, %cst {dimension_numbers = #tpu.dot_dimension_numbers<[1], [0], [0], [1], [0, 0, 1, 1], [], []>} : vector<64x16xf32>, vector<16x64xf32>, vector<64x64xf32> -> vector<64x64xf32>
    %c0_4 = arith.constant 0 : index
    %c0_5 = arith.constant 0 : index
    %4 = vector.load %arg4[%c0_4, %c0_5] : memref<64x1xf32, #tpu.memory_space<vmem>>, vector<64x1xf32>
    %5 = vector.broadcast %4 : vector<64x1xf32> to vector<64x64xf32>
    %6 = arith.addf %3, %5 : vector<64x64xf32>
    %7 = vector.extract_strided_slice %6 {offsets = [0, 0], sizes = [64, 16], strides = [1, 1]} : vector<64x64xf32> to vector<64x16xf32>
    %8 = vector.extract_strided_slice %6 {offsets = [0, 16], sizes = [64, 16], strides = [1, 1]} : vector<64x64xf32> to vector<64x16xf32>
    %9 = vector.extract_strided_slice %6 {offsets = [0, 32], sizes = [64, 16], strides = [1, 1]} : vector<64x64xf32> to vector<64x16xf32>
    %10 = vector.extract_strided_slice %6 {offsets = [0, 48], sizes = [64, 16], strides = [1, 1]} : vector<64x64xf32> to vector<64x16xf32>
    %c0_6 = arith.constant 0 : index
    %c0_7 = arith.constant 0 : index
    %11 = vector.load %arg3[%c0_6, %c0_7] : memref<64x16xf32, #tpu.memory_space<vmem>>, vector<64x16xf32>
    %cst_8 = arith.constant 0.000000e+00 : f32
    %12 = vector.broadcast %cst_8 : f32 to vector<16x16xf32>
    %cst_9 = arith.constant 0.000000e+00 : f32
    %13 = vector.broadcast %cst_9 : f32 to vector<16x16xf32>
    %cst_10 = arith.constant dense<0.000000e+00> : vector<64x16xf32>
    %14 = tpu.matmul %11, %12, %cst_10 {dimension_numbers = #tpu.dot_dimension_numbers<[1], [0], [0], [1], [0, 0, 1, 1], [], []>} : vector<64x16xf32>, vector<16x16xf32>, vector<64x16xf32> -> vector<64x16xf32>
    %15 = arith.addf %7, %14 : vector<64x16xf32>
    %16 = vector.extract_strided_slice %15 {offsets = [0, 0], sizes = [16, 16], strides = [1, 1]} : vector<64x16xf32> to vector<16x16xf32>
    %cst_11 = arith.constant 5.000000e-01 : f32
    %17 = vector.broadcast %cst_11 : f32 to vector<16x16xf32>
    %18 = arith.mulf %17, %16 : vector<16x16xf32>
    %19 = math.tanh %18 : vector<16x16xf32>
    %cst_12 = arith.constant 5.000000e-01 : f32
    %20 = vector.broadcast %cst_12 : f32 to vector<16x16xf32>
    %21 = arith.mulf %20, %19 : vector<16x16xf32>
    %cst_13 = arith.constant 5.000000e-01 : f32
    %22 = vector.broadcast %cst_13 : f32 to vector<16x16xf32>
    %23 = arith.addf %21, %22 : vector<16x16xf32>
    %24 = vector.extract_strided_slice %15 {offsets = [16, 0], sizes = [16, 16], strides = [1, 1]} : vector<64x16xf32> to vector<16x16xf32>
    %cst_14 = arith.constant 5.000000e-01 : f32
    %25 = vector.broadcast %cst_14 : f32 to vector<16x16xf32>
    %26 = arith.mulf %25, %24 : vector<16x16xf32>
    %27 = math.tanh %26 : vector<16x16xf32>
    %cst_15 = arith.constant 5.000000e-01 : f32
    %28 = vector.broadcast %cst_15 : f32 to vector<16x16xf32>
    %29 = arith.mulf %28, %27 : vector<16x16xf32>
    %cst_16 = arith.constant 5.000000e-01 : f32
    %30 = vector.broadcast %cst_16 : f32 to vector<16x16xf32>
    %31 = arith.addf %29, %30 : vector<16x16xf32>
    %32 = vector.extract_strided_slice %15 {offsets = [32, 0], sizes = [16, 16], strides = [1, 1]} : vector<64x16xf32> to vector<16x16xf32>
    %33 = math.tanh %32 : vector<16x16xf32>
    %34 = vector.extract_strided_slice %15 {offsets = [48, 0], sizes = [16, 16], strides = [1, 1]} : vector<64x16xf32> to vector<16x16xf32>
    %cst_17 = arith.constant 5.000000e-01 : f32
    %35 = vector.broadcast %cst_17 : f32 to vector<16x16xf32>
    %36 = arith.mulf %35, %34 : vector<16x16xf32>
    %37 = math.tanh %36 : vector<16x16xf32>
    %cst_18 = arith.constant 5.000000e-01 : f32
    %38 = vector.broadcast %cst_18 : f32 to vector<16x16xf32>
    %39 = arith.mulf %38, %37 : vector<16x16xf32>
    %cst_19 = arith.constant 5.000000e-01 : f32
    %40 = vector.broadcast %cst_19 : f32 to vector<16x16xf32>
    %41 = arith.addf %39, %40 : vector<16x16xf32>
    %42 = arith.mulf %31, %13 : vector<16x16xf32>
    %43 = arith.mulf %23, %33 : vector<16x16xf32>
    %44 = arith.addf %42, %43 : vector<16x16xf32>
    %45 = math.tanh %44 : vector<16x16xf32>
    %46 = arith.mulf %41, %45 : vector<16x16xf32>
    %c0_20 = arith.constant 0 : index
    %c0_21 = arith.constant 0 : index
    %c0_22 = arith.constant 0 : index
    %c0_23 = arith.constant 0 : index
    %47 = vector.load %arg5[%c0_20, %c0_21, %c0_22, %c0_23] : memref<1x4x16x16xf32, #tpu.memory_space<vmem>>, vector<1x1x16x16xf32>
    %48 = vector.shape_cast %47 : vector<1x1x16x16xf32> to vector<16x16xf32>
    %49 = vector.shape_cast %46 : vector<16x16xf32> to vector<1x1x16x16xf32>
    tpu.vector_store %arg5[%c0_20, %c0_21, %c0_22, %c0_23], %49 {strides = array<i32>} : memref<1x4x16x16xf32, #tpu.memory_space<vmem>>, vector<1x1x16x16xf32>,
    %cst_24 = arith.constant dense<0.000000e+00> : vector<64x16xf32>
    %50 = tpu.matmul %11, %46, %cst_24 {dimension_numbers = #tpu.dot_dimension_numbers<[1], [0], [0], [1], [0, 0, 1, 1], [], []>} : vector<64x16xf32>, vector<16x16xf32>, vector<64x16xf32> -> vector<64x16xf32>
    %51 = arith.addf %8, %50 : vector<64x16xf32>
    %52 = vector.extract_strided_slice %51 {offsets = [0, 0], sizes = [16, 16], strides = [1, 1]} : vector<64x16xf32> to vector<16x16xf32>
    %cst_25 = arith.constant 5.000000e-01 : f32
    %53 = vector.broadcast %cst_25 : f32 to vector<16x16xf32>
    %54 = arith.mulf %53, %52 : vector<16x16xf32>
    %55 = math.tanh %54 : vector<16x16xf32>
    %cst_26 = arith.constant 5.000000e-01 : f32
    %56 = vector.broadcast %cst_26 : f32 to vector<16x16xf32>
    %57 = arith.mulf %56, %55 : vector<16x16xf32>
    %cst_27 = arith.constant 5.000000e-01 : f32
    %58 = vector.broadcast %cst_27 : f32 to vector<16x16xf32>
    %59 = arith.addf %57, %58 : vector<16x16xf32>
    %60 = vector.extract_strided_slice %51 {offsets = [16, 0], sizes = [16, 16], strides = [1, 1]} : vector<64x16xf32> to vector<16x16xf32>
    %cst_28 = arith.constant 5.000000e-01 : f32
    %61 = vector.broadcast %cst_28 : f32 to vector<16x16xf32>
    %62 = arith.mulf %61, %60 : vector<16x16xf32>
    %63 = math.tanh %62 : vector<16x16xf32>
    %cst_29 = arith.constant 5.000000e-01 : f32
    %64 = vector.broadcast %cst_29 : f32 to vector<16x16xf32>
    %65 = arith.mulf %64, %63 : vector<16x16xf32>
    %cst_30 = arith.constant 5.000000e-01 : f32
    %66 = vector.broadcast %cst_30 : f32 to vector<16x16xf32>
    %67 = arith.addf %65, %66 : vector<16x16xf32>
    %68 = vector.extract_strided_slice %51 {offsets = [32, 0], sizes = [16, 16], strides = [1, 1]} : vector<64x16xf32> to vector<16x16xf32>
    %69 = math.tanh %68 : vector<16x16xf32>
    %70 = vector.extract_strided_slice %51 {offsets = [48, 0], sizes = [16, 16], strides = [1, 1]} : vector<64x16xf32> to vector<16x16xf32>
    %cst_31 = arith.constant 5.000000e-01 : f32
    %71 = vector.broadcast %cst_31 : f32 to vector<16x16xf32>
    %72 = arith.mulf %71, %70 : vector<16x16xf32>
    %73 = math.tanh %72 : vector<16x16xf32>
    %cst_32 = arith.constant 5.000000e-01 : f32
    %74 = vector.broadcast %cst_32 : f32 to vector<16x16xf32>
    %75 = arith.mulf %74, %73 : vector<16x16xf32>
    %cst_33 = arith.constant 5.000000e-01 : f32
    %76 = vector.broadcast %cst_33 : f32 to vector<16x16xf32>
    %77 = arith.addf %75, %76 : vector<16x16xf32>
    %78 = arith.mulf %67, %44 : vector<16x16xf32>
    %79 = arith.mulf %59, %69 : vector<16x16xf32>
    %80 = arith.addf %78, %79 : vector<16x16xf32>
    %81 = math.tanh %80 : vector<16x16xf32>
    %82 = arith.mulf %77, %81 : vector<16x16xf32>
    %c0_34 = arith.constant 0 : index
    %c1 = arith.constant 1 : index
    %c0_35 = arith.constant 0 : index
    %c0_36 = arith.constant 0 : index
    %83 = vector.load %arg5[%c0_34, %c1, %c0_35, %c0_36] : memref<1x4x16x16xf32, #tpu.memory_space<vmem>>, vector<1x1x16x16xf32>
    %84 = vector.shape_cast %83 : vector<1x1x16x16xf32> to vector<16x16xf32>
    %85 = vector.shape_cast %82 : vector<16x16xf32> to vector<1x1x16x16xf32>
    tpu.vector_store %arg5[%c0_34, %c1, %c0_35, %c0_36], %85 {strides = array<i32>} : memref<1x4x16x16xf32, #tpu.memory_space<vmem>>, vector<1x1x16x16xf32>,
    %cst_37 = arith.constant dense<0.000000e+00> : vector<64x16xf32>
    %86 = tpu.matmul %11, %82, %cst_37 {dimension_numbers = #tpu.dot_dimension_numbers<[1], [0], [0], [1], [0, 0, 1, 1], [], []>} : vector<64x16xf32>, vector<16x16xf32>, vector<64x16xf32> -> vector<64x16xf32>
    %87 = arith.addf %9, %86 : vector<64x16xf32>
    %88 = vector.extract_strided_slice %87 {offsets = [0, 0], sizes = [16, 16], strides = [1, 1]} : vector<64x16xf32> to vector<16x16xf32>
    %cst_38 = arith.constant 5.000000e-01 : f32
    %89 = vector.broadcast %cst_38 : f32 to vector<16x16xf32>
    %90 = arith.mulf %89, %88 : vector<16x16xf32>
    %91 = math.tanh %90 : vector<16x16xf32>
    %cst_39 = arith.constant 5.000000e-01 : f32
    %92 = vector.broadcast %cst_39 : f32 to vector<16x16xf32>
    %93 = arith.mulf %92, %91 : vector<16x16xf32>
    %cst_40 = arith.constant 5.000000e-01 : f32
    %94 = vector.broadcast %cst_40 : f32 to vector<16x16xf32>
    %95 = arith.addf %93, %94 : vector<16x16xf32>
    %96 = vector.extract_strided_slice %87 {offsets = [16, 0], sizes = [16, 16], strides = [1, 1]} : vector<64x16xf32> to vector<16x16xf32>
    %cst_41 = arith.constant 5.000000e-01 : f32
    %97 = vector.broadcast %cst_41 : f32 to vector<16x16xf32>
    %98 = arith.mulf %97, %96 : vector<16x16xf32>
    %99 = math.tanh %98 : vector<16x16xf32>
    %cst_42 = arith.constant 5.000000e-01 : f32
    %100 = vector.broadcast %cst_42 : f32 to vector<16x16xf32>
    %101 = arith.mulf %100, %99 : vector<16x16xf32>
    %cst_43 = arith.constant 5.000000e-01 : f32
    %102 = vector.broadcast %cst_43 : f32 to vector<16x16xf32>
    %103 = arith.addf %101, %102 : vector<16x16xf32>
    %104 = vector.extract_strided_slice %87 {offsets = [32, 0], sizes = [16, 16], strides = [1, 1]} : vector<64x16xf32> to vector<16x16xf32>
    %105 = math.tanh %104 : vector<16x16xf32>
    %106 = vector.extract_strided_slice %87 {offsets = [48, 0], sizes = [16, 16], strides = [1, 1]} : vector<64x16xf32> to vector<16x16xf32>
    %cst_44 = arith.constant 5.000000e-01 : f32
    %107 = vector.broadcast %cst_44 : f32 to vector<16x16xf32>
    %108 = arith.mulf %107, %106 : vector<16x16xf32>
    %109 = math.tanh %108 : vector<16x16xf32>
    %cst_45 = arith.constant 5.000000e-01 : f32
    %110 = vector.broadcast %cst_45 : f32 to vector<16x16xf32>
    %111 = arith.mulf %110, %109 : vector<16x16xf32>
    %cst_46 = arith.constant 5.000000e-01 : f32
    %112 = vector.broadcast %cst_46 : f32 to vector<16x16xf32>
    %113 = arith.addf %111, %112 : vector<16x16xf32>
    %114 = arith.mulf %103, %80 : vector<16x16xf32>
    %115 = arith.mulf %95, %105 : vector<16x16xf32>
    %116 = arith.addf %114, %115 : vector<16x16xf32>
    %117 = math.tanh %116 : vector<16x16xf32>
    %118 = arith.mulf %113, %117 : vector<16x16xf32>
    %c0_47 = arith.constant 0 : index
    %c2 = arith.constant 2 : index
    %c0_48 = arith.constant 0 : index
    %c0_49 = arith.constant 0 : index
    %119 = vector.load %arg5[%c0_47, %c2, %c0_48, %c0_49] : memref<1x4x16x16xf32, #tpu.memory_space<vmem>>, vector<1x1x16x16xf32>
    %120 = vector.shape_cast %119 : vector<1x1x16x16xf32> to vector<16x16xf32>
    %121 = vector.shape_cast %118 : vector<16x16xf32> to vector<1x1x16x16xf32>
    tpu.vector_store %arg5[%c0_47, %c2, %c0_48, %c0_49], %121 {strides = array<i32>} : memref<1x4x16x16xf32, #tpu.memory_space<vmem>>, vector<1x1x16x16xf32>,
    %cst_50 = arith.constant dense<0.000000e+00> : vector<64x16xf32>
    %122 = tpu.matmul %11, %118, %cst_50 {dimension_numbers = #tpu.dot_dimension_numbers<[1], [0], [0], [1], [0, 0, 1, 1], [], []>} : vector<64x16xf32>, vector<16x16xf32>, vector<64x16xf32> -> vector<64x16xf32>
    %123 = arith.addf %10, %122 : vector<64x16xf32>
    %124 = vector.extract_strided_slice %123 {offsets = [0, 0], sizes = [16, 16], strides = [1, 1]} : vector<64x16xf32> to vector<16x16xf32>
    %cst_51 = arith.constant 5.000000e-01 : f32
    %125 = vector.broadcast %cst_51 : f32 to vector<16x16xf32>
    %126 = arith.mulf %125, %124 : vector<16x16xf32>
    %127 = math.tanh %126 : vector<16x16xf32>
    %cst_52 = arith.constant 5.000000e-01 : f32
    %128 = vector.broadcast %cst_52 : f32 to vector<16x16xf32>
    %129 = arith.mulf %128, %127 : vector<16x16xf32>
    %cst_53 = arith.constant 5.000000e-01 : f32
    %130 = vector.broadcast %cst_53 : f32 to vector<16x16xf32>
    %131 = arith.addf %129, %130 : vector<16x16xf32>
    %132 = vector.extract_strided_slice %123 {offsets = [16, 0], sizes = [16, 16], strides = [1, 1]} : vector<64x16xf32> to vector<16x16xf32>
    %cst_54 = arith.constant 5.000000e-01 : f32
    %133 = vector.broadcast %cst_54 : f32 to vector<16x16xf32>
    %134 = arith.mulf %133, %132 : vector<16x16xf32>
    %135 = math.tanh %134 : vector<16x16xf32>
    %cst_55 = arith.constant 5.000000e-01 : f32
    %136 = vector.broadcast %cst_55 : f32 to vector<16x16xf32>
    %137 = arith.mulf %136, %135 : vector<16x16xf32>
    %cst_56 = arith.constant 5.000000e-01 : f32
    %138 = vector.broadcast %cst_56 : f32 to vector<16x16xf32>
    %139 = arith.addf %137, %138 : vector<16x16xf32>
    %140 = vector.extract_strided_slice %123 {offsets = [32, 0], sizes = [16, 16], strides = [1, 1]} : vector<64x16xf32> to vector<16x16xf32>
    %141 = math.tanh %140 : vector<16x16xf32>
    %142 = vector.extract_strided_slice %123 {offsets = [48, 0], sizes = [16, 16], strides = [1, 1]} : vector<64x16xf32> to vector<16x16xf32>
    %cst_57 = arith.constant 5.000000e-01 : f32
    %143 = vector.broadcast %cst_57 : f32 to vector<16x16xf32>
    %144 = arith.mulf %143, %142 : vector<16x16xf32>
    %145 = math.tanh %144 : vector<16x16xf32>
    %cst_58 = arith.constant 5.000000e-01 : f32
    %146 = vector.broadcast %cst_58 : f32 to vector<16x16xf32>
    %147 = arith.mulf %146, %145 : vector<16x16xf32>
    %cst_59 = arith.constant 5.000000e-01 : f32
    %148 = vector.broadcast %cst_59 : f32 to vector<16x16xf32>
    %149 = arith.addf %147, %148 : vector<16x16xf32>
    %150 = arith.mulf %139, %116 : vector<16x16xf32>
    %151 = arith.mulf %131, %141 : vector<16x16xf32>
    %152 = arith.addf %150, %151 : vector<16x16xf32>
    %153 = math.tanh %152 : vector<16x16xf32>
    %154 = arith.mulf %149, %153 : vector<16x16xf32>
    %c0_60 = arith.constant 0 : index
    %c3 = arith.constant 3 : index
    %c0_61 = arith.constant 0 : index
    %c0_62 = arith.constant 0 : index
    %155 = vector.load %arg5[%c0_60, %c3, %c0_61, %c0_62] : memref<1x4x16x16xf32, #tpu.memory_space<vmem>>, vector<1x1x16x16xf32>
    %156 = vector.shape_cast %155 : vector<1x1x16x16xf32> to vector<16x16xf32>
    %157 = vector.shape_cast %154 : vector<16x16xf32> to vector<1x1x16x16xf32>
    tpu.vector_store %arg5[%c0_60, %c3, %c0_61, %c0_62], %157 {strides = array<i32>} : memref<1x4x16x16xf32, #tpu.memory_space<vmem>>, vector<1x1x16x16xf32>,
    return
  }
  func.func @transform_0(%arg0: i32) -> (i32, i32, i32) {
    %c0_i32 = arith.constant 0 : i32
    %c0_i32_0 = arith.constant 0 : i32
    %c0_i32_1 = arith.constant 0 : i32
    return %arg0, %c0_i32, %c0_i32_0 : i32, i32, i32
  }
  func.func @transform_1(%arg0: i32) -> (i32, i32) {
    %c0_i32 = arith.constant 0 : i32
    %c0_i32_0 = arith.constant 0 : i32
    %c0_i32_1 = arith.constant 0 : i32
    return %c0_i32, %c0_i32_0 : i32, i32
  }
  func.func @transform_2(%arg0: i32) -> (i32, i32) {
    %c0_i32 = arith.constant 0 : i32
    %c0_i32_0 = arith.constant 0 : i32
    %c0_i32_1 = arith.constant 0 : i32
    return %c0_i32, %c0_i32_0 : i32, i32
  }
  func.func @transform_3(%arg0: i32) -> (i32, i32) {
    %c0_i32 = arith.constant 0 : i32
    %c0_i32_0 = arith.constant 0 : i32
    %c0_i32_1 = arith.constant 0 : i32
    return %c0_i32, %c0_i32_0 : i32, i32
  }
  func.func @transform_4(%arg0: i32) -> (i32, i32, i32, i32) {
    %c0_i32 = arith.constant 0 : i32
    %c0_i32_0 = arith.constant 0 : i32
    %c0_i32_1 = arith.constant 0 : i32
    %c0_i32_2 = arith.constant 0 : i32
    return %arg0, %c0_i32, %c0_i32_0, %c0_i32_1 : i32, i32, i32, i32
  }
}

</mosaic_0001>

<llo_original>
// kernel: temporal_imputer_forward.1
$region0: #{temporal_imputer_forward.1}
  #allocation0 [shape = 'u32[]', space=smem, size = 0x4, offset = 0x4, fixed_abs, tag = 'smem constant byte address 0x4 - core index']
  #allocation1 [shape = 'u32[144,128]{1,0:T(1,128)}', space=vmem, size = 0x12000, scoped, tag = 'internal scratch']
  %s0 = inlined_call_operand.vmem [shape: f32[1,16,64], index: 0, kind: input, shape index: {}]
  %s1 = inlined_call_operand.vmem [shape: f32[64,16], index: 1, kind: input, shape index: {}]
  %s2 = inlined_call_operand.vmem [shape: f32[64,16], index: 2, kind: input, shape index: {}]
  %s3 = inlined_call_operand.vmem [shape: f32[64,1], index: 3, kind: input, shape index: {}]
  %s4 = inlined_call_operand.vmem [shape: f32[1,4,16,16], index: 4, kind: output, shape index: {}]
  %s5 = sld [smem:[#allocation0]]
  $region26: #{temporal_imputer_forward.1} parent=0
    _
  %s7 = ssub.s32 1, %s5
  %s8 = scalar_select 0, %s7, %s5
  // Predicated region
  $region2: #{temporal_imputer_forward.1} parent=0 // pred_check
    _
  $region3: #{temporal_imputer_forward.1} parent=0 // pred_check_branch
    %10 = sbr.rel (0) target = $region5
  $region4: #{temporal_imputer_forward.1} parent=0 // pred_region
    _
  $region5: #{temporal_imputer_forward.1} parent=0 // pred_fallthru
    _
  // Predicated region
  $region6: #{temporal_imputer_forward.1} parent=0 // pred_check
    _
  $region7: #{temporal_imputer_forward.1} parent=0 // pred_check_branch
    %12 = sbr.rel (0) target = $region9
  $region8: #{temporal_imputer_forward.1} parent=0 // pred_region
    _
  $region9: #{temporal_imputer_forward.1} parent=0 // pred_fallthru
    _
  // Predicated region
  $region10: #{temporal_imputer_forward.1} parent=0 // pred_check
    _
  $region11: #{temporal_imputer_forward.1} parent=0 // pred_check_branch
    %14 = sbr.rel (0) target = $region13
  $region12: #{temporal_imputer_forward.1} parent=0 // pred_region
    _
  $region13: #{temporal_imputer_forward.1} parent=0 // pred_fallthru
    _
  // Predicated region
  $region14: #{temporal_imputer_forward.1} parent=0 // pred_check
    _
  $region15: #{temporal_imputer_forward.1} parent=0 // pred_check_branch
    %16 = sbr.rel (0) target = $region17
  $region16: #{temporal_imputer_forward.1} parent=0 // pred_region
    _
  $region17: #{temporal_imputer_forward.1} parent=0 // pred_fallthru
    _
  %v17 = vld [vmem:[%s1] sm:$0xff]
  %v18 = vld [vmem:[%s1 + $0x8] sm:$0xff]
  %v19 = vld [vmem:[%s1 + $0x10] sm:$0xff]
  %v20 = vld [vmem:[%s1 + $0x18] sm:$0xff]
  %v21 = vld [vmem:[%s1 + $0x20] sm:$0xff]
  %v22 = vld [vmem:[%s1 + $0x28] sm:$0xff]
  %v23 = vld [vmem:[%s1 + $0x30] sm:$0xff]
  %v24 = vld [vmem:[%s1 + $0x38] sm:$0xff]
  %v25 = vld [vmem:[%s0] sm:$0xff]
  %v26 = vld [vmem:[%s0 + $0x8] sm:$0xff]
  %v27 = vld [vmem:[%s3] sm:$0xff]
  %v28 = vld [vmem:[%s3 + $0x8] sm:$0xff]
  %v29 = vld [vmem:[%s3 + $0x10] sm:$0xff]
  %v30 = vld [vmem:[%s3 + $0x18] sm:$0xff]
  %v31 = vld [vmem:[%s3 + $0x20] sm:$0xff]
  %v32 = vld [vmem:[%s3 + $0x28] sm:$0xff]
  %v33 = vld [vmem:[%s3 + $0x30] sm:$0xff]
  %v34 = vld [vmem:[%s3 + $0x38] sm:$0xff]
  %36 = vset.pattern.permute.xlu0 0
  %37 = vperm.xlu0 %36, %v27
  %v38 = vpop.permute.xlu0 %37
  %41 = vset.pattern.permute.xlu0 0
  %42 = vperm.xlu0 %41, %v28
  %v43 = vpop.permute.xlu0 %42
  %46 = vset.pattern.permute.xlu0 0
  %47 = vperm.xlu0 %46, %v29
  %v48 = vpop.permute.xlu0 %47
  %51 = vset.pattern.permute.xlu0 0
  %52 = vperm.xlu0 %51, %v30
  %v53 = vpop.permute.xlu0 %52
  %56 = vset.pattern.permute.xlu0 0
  %57 = vperm.xlu0 %56, %v31
  %v58 = vpop.permute.xlu0 %57
  %61 = vset.pattern.permute.xlu0 0
  %62 = vperm.xlu0 %61, %v32
  %v63 = vpop.permute.xlu0 %62
  %66 = vset.pattern.permute.xlu0 0
  %67 = vperm.xlu0 %66, %v33
  %v68 = vpop.permute.xlu0 %67
  %71 = vset.pattern.permute.xlu0 0
  %72 = vperm.xlu0 %71, %v34
  %v73 = vpop.permute.xlu0 %72
  %vm75 = vcmask 130048
  %v77 = vsel %vm75, %v17, 0
  %v80 = vsel %vm75, %v18, 0
  %v83 = vsel %vm75, %v19, 0
  %v86 = vsel %vm75, %v20, 0
  %v89 = vsel %vm75, %v21, 0
  %v92 = vsel %vm75, %v22, 0
  %v95 = vsel %vm75, %v23, 0
  %v98 = vsel %vm75, %v24, 0
  %100 = vmatprep.subr.mxu0 0.0
  %101 = vmatpush1.msra.mxu0 %v25
  %102 = vmatprep.subr.mxu0 0.0
  %103 = vmatpush1.msra.mxu0 %v26
  %104 = vmatprep.subr.mxu0 0.0
  %105 = vmatpush1.msra.mxu0 0.0
  %106 = vmatprep.subr.mxu0 0.0
  %107 = vmatpush1.msra.mxu0 0.0
  %108 = vmatprep.subr.mxu0 0.0
  %109 = vmatpush1.msra.mxu0 0.0
  %110 = vmatprep.subr.mxu0 0.0
  %111 = vmatpush1.msra.mxu0 0.0
  %112 = vmatprep.subr.mxu0 0.0
  %113 = vmatpush1.msra.mxu0 0.0
  %114 = vmatprep.subr.mxu0 0.0
  %115 = vmatpush1.msra.mxu0 0.0
  %116 = vmatprep.subr.mxu0 0.0
  %117 = vmatpush1.msra.mxu0 0.0
  %118 = vmatprep.subr.mxu0 0.0
  %119 = vmatpush1.msra.mxu0 0.0
  %120 = vmatprep.subr.mxu0 0.0
  %121 = vmatpush1.msra.mxu0 0.0
  %122 = vmatprep.subr.mxu0 0.0
  %123 = vmatpush1.msra.mxu0 0.0
  %124 = vmatprep.subr.mxu0 0.0
  %125 = vmatpush1.msra.mxu0 0.0
  %126 = vmatprep.subr.mxu0 0.0
  %127 = vmatpush1.msra.mxu0 0.0
  %128 = vmatprep.subr.mxu0 0.0
  %129 = vmatpush1.msra.mxu0 0.0
  %130 = vmatprep.subr.mxu0 0.0
  %131 = vmatpush1.msra.mxu0 0.0
  %132 = vmatprep.subr.mxu0 0.0
  %133 = vmatpush1.msra.mxu0 0.0
  %134 = vmatprep.subr.mxu0 0.0
  %135 = vmatpush1.msra.mxu0 0.0
  %136 = vmatprep.subr.mxu0 0.0
  %137 = vmatpush1.msra.mxu0 0.0
  %138 = vmatprep.subr.mxu0 0.0
  %139 = vmatpush1.msra.mxu0 0.0
  %140 = vmatprep.subr.mxu0 0.0
  %141 = vmatpush1.msra.mxu0 0.0
  %142 = vmatprep.subr.mxu0 0.0
  %143 = vmatpush1.msra.mxu0 0.0
  %144 = vmatprep.subr.mxu0 0.0
  %145 = vmatpush1.msra.mxu0 0.0
  %146 = vmatprep.subr.mxu0 0.0
  %147 = vmatpush1.msra.mxu0 0.0
  %148 = vmatprep.subr.mxu0 0.0
  %149 = vmatpush1.msra.mxu0 0.0
  %150 = vmatprep.subr.mxu0 0.0
  %151 = vmatpush1.msra.mxu0 0.0
  %152 = vmatprep.subr.mxu0 0.0
  %153 = vmatpush1.msra.mxu0 0.0
  %154 = vmatprep.subr.mxu0 0.0
  %155 = vmatpush1.msra.mxu0 0.0
  %156 = vmatprep.subr.mxu0 0.0
  %157 = vmatpush1.msra.mxu0 0.0
  %158 = vmatprep.subr.mxu0 0.0
  %159 = vmatpush1.msra.mxu0 0.0
  %160 = vmatprep.subr.mxu0 0.0
  %161 = vmatpush1.msra.mxu0 0.0
  %162 = vmatprep.subr.mxu0 0.0
  %163 = vmatpush1.msra.mxu0 0.0
  %164 = vmatprep.mubr.f32.mxu0 0.0
  %165 = vmatmul.mubr.f32.gmra.mrb[0].mxu0 %v77
  %v166 = vpop.f32.mrb[0].mxu0
  %v167 = vadd.f32 %v38, %v166
  %v168 = vpop.f32.mrb[0].mxu0
  %169 = vmatprep.mubr.f32.mxu0 0.0
  %170 = vmatmul.mubr.f32.gmra.mrb[0].mxu0 %v80
  %v171 = vpop.f32.mrb[0].mxu0
  %v172 = vadd.f32 %v43, %v171
  %v173 = vpop.f32.mrb[0].mxu0
  %174 = vmatprep.mubr.f32.mxu0 0.0
  %175 = vmatmul.mubr.f32.gmra.mrb[0].mxu0 %v83
  %v176 = vpop.f32.mrb[0].mxu0
  %v177 = vadd.f32 %v48, %v176
  %v178 = vpop.f32.mrb[0].mxu0
  %179 = vmatprep.mubr.f32.mxu0 0.0
  %180 = vmatmul.mubr.f32.gmra.mrb[0].mxu0 %v86
  %v181 = vpop.f32.mrb[0].mxu0
  %v182 = vadd.f32 %v53, %v181
  %v183 = vpop.f32.mrb[0].mxu0
  %184 = vmatprep.mubr.f32.mxu0 0.0
  %185 = vmatmul.mubr.f32.gmra.mrb[0].mxu0 %v89
  %v186 = vpop.f32.mrb[0].mxu0
  %v187 = vadd.f32 %v58, %v186
  %v188 = vpop.f32.mrb[0].mxu0
  %189 = vmatprep.mubr.f32.mxu0 0.0
  %190 = vmatmul.mubr.f32.gmra.mrb[0].mxu0 %v92
  %v191 = vpop.f32.mrb[0].mxu0
  %v192 = vadd.f32 %v63, %v191
  %v193 = vpop.f32.mrb[0].mxu0
  %194 = vmatprep.mubr.f32.mxu0 0.0
  %195 = vmatmul.mubr.f32.gmra.mrb[0].mxu0 %v95
  %v196 = vpop.f32.mrb[0].mxu0
  %v197 = vadd.f32 %v68, %v196
  %v198 = vpop.f32.mrb[0].mxu0
  %199 = vmatprep.mubr.f32.mxu0 0.0
  %200 = vmatmul.mubr.f32.gmra.mrb[0].mxu0 %v98
  %v201 = vpop.f32.mrb[0].mxu0
  %v202 = vadd.f32 %v73, %v201
  %v203 = vpop.f32.mrb[0].mxu0
  %204 = vdwg.mxu0
  %v205 = vld [vmem:[%s2] sm:$0xff]
  %v206 = vld [vmem:[%s2 + $0x8] sm:$0xff]
  %v207 = vld [vmem:[%s2 + $0x10] sm:$0xff]
  %v208 = vld [vmem:[%s2 + $0x18] sm:$0xff]
  %v209 = vld [vmem:[%s2 + $0x20] sm:$0xff]
  %v210 = vld [vmem:[%s2 + $0x28] sm:$0xff]
  %v211 = vld [vmem:[%s2 + $0x30] sm:$0xff]
  %v212 = vld [vmem:[%s2 + $0x38] sm:$0xff]
  %v214 = vsel %vm75, %v205, 0
  %v217 = vsel %vm75, %v206, 0
  %v220 = vsel %vm75, %v207, 0
  %v223 = vsel %vm75, %v208, 0
  %v226 = vsel %vm75, %v209, 0
  %v229 = vsel %vm75, %v210, 0
  %v232 = vsel %vm75, %v211, 0
  %v235 = vsel %vm75, %v212, 0
  %237 = vmatprep.subr.mxu0 0.0
  %238 = vmatpush1.msra.mxu0 0.0
  %239 = vmatprep.subr.mxu0 0.0
  %240 = vmatpush1.msra.mxu0 0.0
  %241 = vmatprep.subr.mxu0 0.0
  %242 = vmatpush1.msra.mxu0 0.0
  %243 = vmatprep.subr.mxu0 0.0
  %244 = vmatpush1.msra.mxu0 0.0
  %245 = vmatprep.subr.mxu0 0.0
  %246 = vmatpush1.msra.mxu0 0.0
  %247 = vmatprep.subr.mxu0 0.0
  %248 = vmatpush1.msra.mxu0 0.0
  %249 = vmatprep.subr.mxu0 0.0
  %250 = vmatpush1.msra.mxu0 0.0
  %251 = vmatprep.subr.mxu0 0.0
  %252 = vmatpush1.msra.mxu0 0.0
  %253 = vmatprep.subr.mxu0 0.0
  %254 = vmatpush1.msra.mxu0 0.0
  %255 = vmatprep.subr.mxu0 0.0
  %256 = vmatpush1.msra.mxu0 0.0
  %257 = vmatprep.subr.mxu0 0.0
  %258 = vmatpush1.msra.mxu0 0.0
  %259 = vmatprep.subr.mxu0 0.0
  %260 = vmatpush1.msra.mxu0 0.0
  %261 = vmatprep.subr.mxu0 0.0
  %262 = vmatpush1.msra.mxu0 0.0
  %263 = vmatprep.subr.mxu0 0.0
  %264 = vmatpush1.msra.mxu0 0.0
  %265 = vmatprep.subr.mxu0 0.0
  %266 = vmatpush1.msra.mxu0 0.0
  %267 = vmatprep.subr.mxu0 0.0
  %268 = vmatpush1.msra.mxu0 0.0
  %269 = vmatprep.subr.mxu0 0.0
  %270 = vmatpush1.msra.mxu0 0.0
  %271 = vmatprep.subr.mxu0 0.0
  %272 = vmatpush1.msra.mxu0 0.0
  %273 = vmatprep.subr.mxu0 0.0
  %274 = vmatpush1.msra.mxu0 0.0
  %275 = vmatprep.subr.mxu0 0.0
  %276 = vmatpush1.msra.mxu0 0.0
  %277 = vmatprep.subr.mxu0 0.0
  %278 = vmatpush1.msra.mxu0 0.0
  %279 = vmatprep.subr.mxu0 0.0
  %280 = vmatpush1.msra.mxu0 0.0
  %281 = vmatprep.subr.mxu0 0.0
  %282 = vmatpush1.msra.mxu0 0.0
  %283 = vmatprep.subr.mxu0 0.0
  %284 = vmatpush1.msra.mxu0 0.0
  %285 = vmatprep.subr.mxu0 0.0
  %286 = vmatpush1.msra.mxu0 0.0
  %287 = vmatprep.subr.mxu0 0.0
  %288 = vmatpush1.msra.mxu0 0.0
  %289 = vmatprep.subr.mxu0 0.0
  %290 = vmatpush1.msra.mxu0 0.0
  %291 = vmatprep.subr.mxu0 0.0
  %292 = vmatpush1.msra.mxu0 0.0
  %293 = vmatprep.subr.mxu0 0.0
  %294 = vmatpush1.msra.mxu0 0.0
  %295 = vmatprep.subr.mxu0 0.0
  %296 = vmatpush1.msra.mxu0 0.0
  %297 = vmatprep.subr.mxu0 0.0
  %298 = vmatpush1.msra.mxu0 0.0
  %299 = vmatprep.subr.mxu0 0.0
  %300 = vmatpush1.msra.mxu0 0.0
  %301 = vmatprep.mubr.f32.mxu0 0.0
  %302 = vmatmul.mubr.f32.gmra.mrb[0].mxu0 %v214
  %v303 = vpop.f32.mrb[0].mxu0
  %v304 = vadd.f32 0.0, %v303
  %v305 = vpop.f32.mrb[0].mxu0
  %306 = vmatprep.mubr.f32.mxu0 0.0
  %307 = vmatmul.mubr.f32.gmra.mrb[0].mxu0 %v217
  %v308 = vpop.f32.mrb[0].mxu0
  %v309 = vadd.f32 0.0, %v308
  %v310 = vpop.f32.mrb[0].mxu0
  %311 = vmatprep.mubr.f32.mxu0 0.0
  %312 = vmatmul.mubr.f32.gmra.mrb[0].mxu0 %v220
  %v313 = vpop.f32.mrb[0].mxu0
  %v314 = vadd.f32 0.0, %v313
  %v315 = vpop.f32.mrb[0].mxu0
  %316 = vmatprep.mubr.f32.mxu0 0.0
  %317 = vmatmul.mubr.f32.gmra.mrb[0].mxu0 %v223
  %v318 = vpop.f32.mrb[0].mxu0
  %v319 = vadd.f32 0.0, %v318
  %v320 = vpop.f32.mrb[0].mxu0
  %321 = vmatprep.mubr.f32.mxu0 0.0
  %322 = vmatmul.mubr.f32.gmra.mrb[0].mxu0 %v226
  %v323 = vpop.f32.mrb[0].mxu0
  %v324 = vadd.f32 0.0, %v323
  %v325 = vpop.f32.mrb[0].mxu0
  %326 = vmatprep.mubr.f32.mxu0 0.0
  %327 = vmatmul.mubr.f32.gmra.mrb[0].mxu0 %v229
  %v328 = vpop.f32.mrb[0].mxu0
  %v329 = vadd.f32 0.0, %v328
  %v330 = vpop.f32.mrb[0].mxu0
  %331 = vmatprep.mubr.f32.mxu0 0.0
  %332 = vmatmul.mubr.f32.gmra.mrb[0].mxu0 %v232
  %v333 = vpop.f32.mrb[0].mxu0
  %v334 = vadd.f32 0.0, %v333
  %v335 = vpop.f32.mrb[0].mxu0
  %336 = vmatprep.mubr.f32.mxu0 0.0
  %337 = vmatmul.mubr.f32.gmra.mrb[0].mxu0 %v235
  %v338 = vpop.f32.mrb[0].mxu0
  %v339 = vadd.f32 0.0, %v338
  %v340 = vpop.f32.mrb[0].mxu0
  %341 = vdwg.mxu0
  %v342 = vadd.f32 %v167, %v304
  %v343 = vadd.f32 %v172, %v309
  %v344 = vadd.f32 %v177, %v314
  %v345 = vadd.f32 %v182, %v319
  %v346 = vadd.f32 %v187, %v324
  %v347 = vadd.f32 %v192, %v329
  %v348 = vadd.f32 %v197, %v334
  %v349 = vadd.f32 %v202, %v339
  %v350 = vmul.f32 %v342, 0.5
  %v351 = vmul.f32 %v343, 0.5
  %v352 = vtanh.pop %v350
  %v353 = vtanh.pop %v351
  %v354 = vmul.f32 %v352, 0.5
  %v355 = vmul.f32 %v353, 0.5
  %v356 = vadd.f32 %v354, 0.5
  %v357 = vadd.f32 %v355, 0.5
  %v358 = vmul.f32 %v344, 0.5
  %v359 = vmul.f32 %v345, 0.5
  %v360 = vtanh.pop %v358
  %v361 = vtanh.pop %v359
  %v362 = vmul.f32 %v360, 0.5
  %v363 = vmul.f32 %v361, 0.5
  %v364 = vadd.f32 %v362, 0.5
  %v365 = vadd.f32 %v363, 0.5
  %v366 = vtanh.pop %v346
  %v367 = vtanh.pop %v347
  %v368 = vmul.f32 %v348, 0.5
  %v369 = vmul.f32 %v349, 0.5
  %v370 = vtanh.pop %v368
  %v371 = vtanh.pop %v369
  %v372 = vmul.f32 %v370, 0.5
  %v373 = vmul.f32 %v371, 0.5
  %v374 = vadd.f32 %v372, 0.5
  %v375 = vadd.f32 %v373, 0.5
  %v376 = vmul.f32 %v364, 0.0
  %v377 = vmul.f32 %v365, 0.0
  %v378 = vmul.f32 %v356, %v366
  %v379 = vmul.f32 %v357, %v367
  %v380 = vadd.f32 %v376, %v378
  %v381 = vadd.f32 %v377, %v379
  %v382 = vtanh.pop %v380
  %v383 = vtanh.pop %v381
  %v384 = vmul.f32 %v374, %v382
  %v385 = vmul.f32 %v375, %v383
  %386 = vst.msk [vmem:[%s4] sm:$0xff] %vm75, %v384
  %387 = vst.msk [vmem:[%s4 + $0x8] sm:$0xff] %vm75, %v385
  %388 = vmatprep.subr.mxu0 0.0
  %389 = vmatpush1.msra.mxu0 %v384
  %390 = vmatprep.subr.mxu0 0.0
  %391 = vmatpush1.msra.mxu0 %v385
  %392 = vmatprep.subr.mxu0 0.0
  %393 = vmatpush1.msra.mxu0 0.0
  %394 = vmatprep.subr.mxu0 0.0
  %395 = vmatpush1.msra.mxu0 0.0
  %396 = vmatprep.subr.mxu0 0.0
  %397 = vmatpush1.msra.mxu0 0.0
  %398 = vmatprep.subr.mxu0 0.0
  %399 = vmatpush1.msra.mxu0 0.0
  %400 = vmatprep.subr.mxu0 0.0
  %401 = vmatpush1.msra.mxu0 0.0
  %402 = vmatprep.subr.mxu0 0.0
  %403 = vmatpush1.msra.mxu0 0.0
  %404 = vmatprep.subr.mxu0 0.0
  %405 = vmatpush1.msra.mxu0 0.0
  %406 = vmatprep.subr.mxu0 0.0
  %407 = vmatpush1.msra.mxu0 0.0
  %408 = vmatprep.subr.mxu0 0.0
  %409 = vmatpush1.msra.mxu0 0.0
  %410 = vmatprep.subr.mxu0 0.0
  %411 = vmatpush1.msra.mxu0 0.0
  %412 = vmatprep.subr.mxu0 0.0
  %413 = vmatpush1.msra.mxu0 0.0
  %414 = vmatprep.subr.mxu0 0.0
  %415 = vmatpush1.msra.mxu0 0.0
  %416 = vmatprep.subr.mxu0 0.0
  %417 = vmatpush1.msra.mxu0 0.0
  %418 = vmatprep.subr.mxu0 0.0
  %419 = vmatpush1.msra.mxu0 0.0
  %420 = vmatprep.subr.mxu0 0.0
  %421 = vmatpush1.msra.mxu0 0.0
  %422 = vmatprep.subr.mxu0 0.0
  %423 = vmatpush1.msra.mxu0 0.0
  %424 = vmatprep.subr.mxu0 0.0
  %425 = vmatpush1.msra.mxu0 0.0
  %426 = vmatprep.subr.mxu0 0.0
  %427 = vmatpush1.msra.mxu0 0.0
  %428 = vmatprep.subr.mxu0 0.0
  %429 = vmatpush1.msra.mxu0 0.0
  %430 = vmatprep.subr.mxu0 0.0
  %431 = vmatpush1.msra.mxu0 0.0
  %432 = vmatprep.subr.mxu0 0.0
  %433 = vmatpush1.msra.mxu0 0.0
  %434 = vmatprep.subr.mxu0 0.0
  %435 = vmatpush1.msra.mxu0 0.0
  %436 = vmatprep.subr.mxu0 0.0
  %437 = vmatpush1.msra.mxu0 0.0
  %438 = vmatprep.subr.mxu0 0.0
  %439 = vmatpush1.msra.mxu0 0.0
  %440 = vmatprep.subr.mxu0 0.0
  %441 = vmatpush1.msra.mxu0 0.0
  %442 = vmatprep.subr.mxu0 0.0
  %443 = vmatpush1.msra.mxu0 0.0
  %444 = vmatprep.subr.mxu0 0.0
  %445 = vmatpush1.msra.mxu0 0.0
  %446 = vmatprep.subr.mxu0 0.0
  %447 = vmatpush1.msra.mxu0 0.0
  %448 = vmatprep.subr.mxu0 0.0
  %449 = vmatpush1.msra.mxu0 0.0
  %450 = vmatprep.subr.mxu0 0.0
  %451 = vmatpush1.msra.mxu0 0.0
  %452 = vmatprep.mubr.f32.mxu0 0.0
  %453 = vmatmul.mubr.f32.gmra.mrb[0].mxu0 %v214
  %v454 = vpop.f32.mrb[0].mxu0
  %v455 = vadd.f32 0.0, %v454
  %v456 = vpop.f32.mrb[0].mxu0
  %457 = vmatprep.mubr.f32.mxu0 0.0
  %458 = vmatmul.mubr.f32.gmra.mrb[0].mxu0 %v217
  %v459 = vpop.f32.mrb[0].mxu0
  %v460 = vadd.f32 0.0, %v459
  %v461 = vpop.f32.mrb[0].mxu0
  %462 = vmatprep.mubr.f32.mxu0 0.0
  %463 = vmatmul.mubr.f32.gmra.mrb[0].mxu0 %v220
  %v464 = vpop.f32.mrb[0].mxu0
  %v465 = vadd.f32 0.0, %v464
  %v466 = vpop.f32.mrb[0].mxu0
  %467 = vmatprep.mubr.f32.mxu0 0.0
  %468 = vmatmul.mubr.f32.gmra.mrb[0].mxu0 %v223
  %v469 = vpop.f32.mrb[0].mxu0
  %v470 = vadd.f32 0.0, %v469
  %v471 = vpop.f32.mrb[0].mxu0
  %472 = vmatprep.mubr.f32.mxu0 0.0
  %473 = vmatmul.mubr.f32.gmra.mrb[0].mxu0 %v226
  %v474 = vpop.f32.mrb[0].mxu0
  %v475 = vadd.f32 0.0, %v474
  %v476 = vpop.f32.mrb[0].mxu0
  %477 = vmatprep.mubr.f32.mxu0 0.0
  %478 = vmatmul.mubr.f32.gmra.mrb[0].mxu0 %v229
  %v479 = vpop.f32.mrb[0].mxu0
  %v480 = vadd.f32 0.0, %v479
  %v481 = vpop.f32.mrb[0].mxu0
  %482 = vmatprep.mubr.f32.mxu0 0.0
  %483 = vmatmul.mubr.f32.gmra.mrb[0].mxu0 %v232
  %v484 = vpop.f32.mrb[0].mxu0
  %v485 = vadd.f32 0.0, %v484
  %v486 = vpop.f32.mrb[0].mxu0
  %487 = vmatprep.mubr.f32.mxu0 0.0
  %488 = vmatmul.mubr.f32.gmra.mrb[0].mxu0 %v235
  %v489 = vpop.f32.mrb[0].mxu0
  %v490 = vadd.f32 0.0, %v489
  %v491 = vpop.f32.mrb[0].mxu0
  %492 = vdwg.mxu0
  %501 = vrot.lane.b32.xlu0 %v455, 16
  %v502 = vpop.permute.xlu0 %501
  %503 = vrot.lane.b32.xlu0 %v460, 16
  %v504 = vpop.permute.xlu0 %503
  %505 = vrot.lane.b32.xlu0 %v465, 16
  %v506 = vpop.permute.xlu0 %505
  %507 = vrot.lane.b32.xlu0 %v470, 16
  %v508 = vpop.permute.xlu0 %507
  %509 = vrot.lane.b32.xlu0 %v475, 16
  %v510 = vpop.permute.xlu0 %509
  %511 = vrot.lane.b32.xlu0 %v480, 16
  %v512 = vpop.permute.xlu0 %511
  %513 = vrot.lane.b32.xlu0 %v485, 16
  %v514 = vpop.permute.xlu0 %513
  %515 = vrot.lane.b32.xlu0 %v490, 16
  %v516 = vpop.permute.xlu0 %515
  %v525 = vadd.f32 %v167, %v502
  %v526 = vadd.f32 %v172, %v504
  %v527 = vadd.f32 %v177, %v506
  %v528 = vadd.f32 %v182, %v508
  %v529 = vadd.f32 %v187, %v510
  %v530 = vadd.f32 %v192, %v512
  %v531 = vadd.f32 %v197, %v514
  %v532 = vadd.f32 %v202, %v516
  %v533 = vmul.f32 %v525, 0.5
  %v534 = vmul.f32 %v526, 0.5
  %v535 = vtanh.pop %v533
  %v536 = vtanh.pop %v534
  %v537 = vmul.f32 %v535, 0.5
  %v538 = vmul.f32 %v536, 0.5
  %v539 = vadd.f32 %v537, 0.5
  %v540 = vadd.f32 %v538, 0.5
  %v541 = vmul.f32 %v527, 0.5
  %v542 = vmul.f32 %v528, 0.5
  %v543 = vtanh.pop %v541
  %v544 = vtanh.pop %v542
  %v545 = vmul.f32 %v543, 0.5
  %v546 = vmul.f32 %v544, 0.5
  %v547 = vadd.f32 %v545, 0.5
  %v548 = vadd.f32 %v546, 0.5
  %v549 = vtanh.pop %v529
  %v550 = vtanh.pop %v530
  %v551 = vmul.f32 %v531, 0.5
  %v552 = vmul.f32 %v532, 0.5
  %v553 = vtanh.pop %v551
  %v554 = vtanh.pop %v552
  %v555 = vmul.f32 %v553, 0.5
  %v556 = vmul.f32 %v554, 0.5
  %v557 = vadd.f32 %v555, 0.5
  %v558 = vadd.f32 %v556, 0.5
  %561 = vrot.lane.b32.xlu0 %v380, 16
  %v562 = vpop.permute.xlu0 %561
  %563 = vrot.lane.b32.xlu0 %v381, 16
  %v564 = vpop.permute.xlu0 %563
  %v567 = vmul.f32 %v547, %v562
  %v568 = vmul.f32 %v548, %v564
  %v569 = vmul.f32 %v539, %v549
  %v570 = vmul.f32 %v540, %v550
  %v571 = vadd.f32 %v567, %v569
  %v572 = vadd.f32 %v568, %v570
  %v573 = vtanh.pop %v571
  %v574 = vtanh.pop %v572
  %v575 = vmul.f32 %v557, %v573
  %v576 = vmul.f32 %v558, %v574
  %579 = vrot.lane.b32.xlu0 %v575, 112
  %v580 = vpop.permute.xlu0 %579
  %581 = vrot.lane.b32.xlu0 %v576, 112
  %v582 = vpop.permute.xlu0 %581
  %s585 = scalar_lea.vmem %s4, 16
  %586 = vst.msk [vmem:[%s585] sm:$0xff] %vm75, %v580
  %587 = vst.msk [vmem:[%s585 + $0x8] sm:$0xff] %vm75, %v582
  %588 = vmatprep.subr.mxu0 0.0
  %589 = vmatpush1.msra.mxu0 %v580
  %590 = vmatprep.subr.mxu0 0.0
  %591 = vmatpush1.msra.mxu0 %v582
  %592 = vmatprep.subr.mxu0 0.0
  %593 = vmatpush1.msra.mxu0 0.0
  %594 = vmatprep.subr.mxu0 0.0
  %595 = vmatpush1.msra.mxu0 0.0
  %596 = vmatprep.subr.mxu0 0.0
  %597 = vmatpush1.msra.mxu0 0.0
  %598 = vmatprep.subr.mxu0 0.0
  %599 = vmatpush1.msra.mxu0 0.0
  %600 = vmatprep.subr.mxu0 0.0
  %601 = vmatpush1.msra.mxu0 0.0
  %602 = vmatprep.subr.mxu0 0.0
  %603 = vmatpush1.msra.mxu0 0.0
  %604 = vmatprep.subr.mxu0 0.0
  %605 = vmatpush1.msra.mxu0 0.0
  %606 = vmatprep.subr.mxu0 0.0
  %607 = vmatpush1.msra.mxu0 0.0
  %608 = vmatprep.subr.mxu0 0.0
  %609 = vmatpush1.msra.mxu0 0.0
  %610 = vmatprep.subr.mxu0 0.0
  %611 = vmatpush1.msra.mxu0 0.0
  %612 = vmatprep.subr.mxu0 0.0
  %613 = vmatpush1.msra.mxu0 0.0
  %614 = vmatprep.subr.mxu0 0.0
  %615 = vmatpush1.msra.mxu0 0.0
  %616 = vmatprep.subr.mxu0 0.0
  %617 = vmatpush1.msra.mxu0 0.0
  %618 = vmatprep.subr.mxu0 0.0
  %619 = vmatpush1.msra.mxu0 0.0
  %620 = vmatprep.subr.mxu0 0.0
  %621 = vmatpush1.msra.mxu0 0.0
  %622 = vmatprep.subr.mxu0 0.0
  %623 = vmatpush1.msra.mxu0 0.0
  %624 = vmatprep.subr.mxu0 0.0
  %625 = vmatpush1.msra.mxu0 0.0
  %626 = vmatprep.subr.mxu0 0.0
  %627 = vmatpush1.msra.mxu0 0.0
  %628 = vmatprep.subr.mxu0 0.0
  %629 = vmatpush1.msra.mxu0 0.0
  %630 = vmatprep.subr.mxu0 0.0
  %631 = vmatpush1.msra.mxu0 0.0
  %632 = vmatprep.subr.mxu0 0.0
  %633 = vmatpush1.msra.mxu0 0.0
  %634 = vmatprep.subr.mxu0 0.0
  %635 = vmatpush1.msra.mxu0 0.0
  %636 = vmatprep.subr.mxu0 0.0
  %637 = vmatpush1.msra.mxu0 0.0
  %638 = vmatprep.subr.mxu0 0.0
  %639 = vmatpush1.msra.mxu0 0.0
  %640 = vmatprep.subr.mxu0 0.0
  %641 = vmatpush1.msra.mxu0 0.0
  %642 = vmatprep.subr.mxu0 0.0
  %643 = vmatpush1.msra.mxu0 0.0
  %644 = vmatprep.subr.mxu0 0.0
  %645 = vmatpush1.msra.mxu0 0.0
  %646 = vmatprep.subr.mxu0 0.0
  %647 = vmatpush1.msra.mxu0 0.0
  %648 = vmatprep.subr.mxu0 0.0
  %649 = vmatpush1.msra.mxu0 0.0
  %650 = vmatprep.subr.mxu0 0.0
  %651 = vmatpush1.msra.mxu0 0.0
  %652 = vmatprep.mubr.f32.mxu0 0.0
  %653 = vmatmul.mubr.f32.gmra.mrb[0].mxu0 %v214
  %v654 = vpop.f32.mrb[0].mxu0
  %v655 = vadd.f32 0.0, %v654
  %v656 = vpop.f32.mrb[0].mxu0
  %657 = vmatprep.mubr.f32.mxu0 0.0
  %658 = vmatmul.mubr.f32.gmra.mrb[0].mxu0 %v217
  %v659 = vpop.f32.mrb[0].mxu0
  %v660 = vadd.f32 0.0, %v659
  %v661 = vpop.f32.mrb[0].mxu0
  %662 = vmatprep.mubr.f32.mxu0 0.0
  %663 = vmatmul.mubr.f32.gmra.mrb[0].mxu0 %v220
  %v664 = vpop.f32.mrb[0].mxu0
  %v665 = vadd.f32 0.0, %v664
  %v666 = vpop.f32.mrb[0].mxu0
  %667 = vmatprep.mubr.f32.mxu0 0.0
  %668 = vmatmul.mubr.f32.gmra.mrb[0].mxu0 %v223
  %v669 = vpop.f32.mrb[0].mxu0
  %v670 = vadd.f32 0.0, %v669
  %v671 = vpop.f32.mrb[0].mxu0
  %672 = vmatprep.mubr.f32.mxu0 0.0
  %673 = vmatmul.mubr.f32.gmra.mrb[0].mxu0 %v226
  %v674 = vpop.f32.mrb[0].mxu0
  %v675 = vadd.f32 0.0, %v674
  %v676 = vpop.f32.mrb[0].mxu0
  %677 = vmatprep.mubr.f32.mxu0 0.0
  %678 = vmatmul.mubr.f32.gmra.mrb[0].mxu0 %v229
  %v679 = vpop.f32.mrb[0].mxu0
  %v680 = vadd.f32 0.0, %v679
  %v681 = vpop.f32.mrb[0].mxu0
  %682 = vmatprep.mubr.f32.mxu0 0.0
  %683 = vmatmul.mubr.f32.gmra.mrb[0].mxu0 %v232
  %v684 = vpop.f32.mrb[0].mxu0
  %v685 = vadd.f32 0.0, %v684
  %v686 = vpop.f32.mrb[0].mxu0
  %687 = vmatprep.mubr.f32.mxu0 0.0
  %688 = vmatmul.mubr.f32.gmra.mrb[0].mxu0 %v235
  %v689 = vpop.f32.mrb[0].mxu0
  %v690 = vadd.f32 0.0, %v689
  %v691 = vpop.f32.mrb[0].mxu0
  %692 = vdwg.mxu0
  %701 = vrot.lane.b32.xlu0 %v655, 32
  %v702 = vpop.permute.xlu0 %701
  %703 = vrot.lane.b32.xlu0 %v660, 32
  %v704 = vpop.permute.xlu0 %703
  %705 = vrot.lane.b32.xlu0 %v665, 32
  %v706 = vpop.permute.xlu0 %705
  %707 = vrot.lane.b32.xlu0 %v670, 32
  %v708 = vpop.permute.xlu0 %707
  %709 = vrot.lane.b32.xlu0 %v675, 32
  %v710 = vpop.permute.xlu0 %709
  %711 = vrot.lane.b32.xlu0 %v680, 32
  %v712 = vpop.permute.xlu0 %711
  %713 = vrot.lane.b32.xlu0 %v685, 32
  %v714 = vpop.permute.xlu0 %713
  %715 = vrot.lane.b32.xlu0 %v690, 32
  %v716 = vpop.permute.xlu0 %715
  %v725 = vadd.f32 %v167, %v702
  %v726 = vadd.f32 %v172, %v704
  %v727 = vadd.f32 %v177, %v706
  %v728 = vadd.f32 %v182, %v708
  %v729 = vadd.f32 %v187, %v710
  %v730 = vadd.f32 %v192, %v712
  %v731 = vadd.f32 %v197, %v714
  %v732 = vadd.f32 %v202, %v716
  %v733 = vmul.f32 %v725, 0.5
  %v734 = vmul.f32 %v726, 0.5
  %v735 = vtanh.pop %v733
  %v736 = vtanh.pop %v734
  %v737 = vmul.f32 %v735, 0.5
  %v738 = vmul.f32 %v736, 0.5
  %v739 = vadd.f32 %v737, 0.5
  %v740 = vadd.f32 %v738, 0.5
  %v741 = vmul.f32 %v727, 0.5
  %v742 = vmul.f32 %v728, 0.5
  %v743 = vtanh.pop %v741
  %v744 = vtanh.pop %v742
  %v745 = vmul.f32 %v743, 0.5
  %v746 = vmul.f32 %v744, 0.5
  %v747 = vadd.f32 %v745, 0.5
  %v748 = vadd.f32 %v746, 0.5
  %v749 = vtanh.pop %v729
  %v750 = vtanh.pop %v730
  %v751 = vmul.f32 %v731, 0.5
  %v752 = vmul.f32 %v732, 0.5
  %v753 = vtanh.pop %v751
  %v754 = vtanh.pop %v752
  %v755 = vmul.f32 %v753, 0.5
  %v756 = vmul.f32 %v754, 0.5
  %v757 = vadd.f32 %v755, 0.5
  %v758 = vadd.f32 %v756, 0.5
  %761 = vrot.lane.b32.xlu0 %v571, 16
  %v762 = vpop.permute.xlu0 %761
  %763 = vrot.lane.b32.xlu0 %v572, 16
  %v764 = vpop.permute.xlu0 %763
  %v767 = vmul.f32 %v747, %v762
  %v768 = vmul.f32 %v748, %v764
  %v769 = vmul.f32 %v739, %v749
  %v770 = vmul.f32 %v740, %v750
  %v771 = vadd.f32 %v767, %v769
  %v772 = vadd.f32 %v768, %v770
  %v773 = vtanh.pop %v771
  %v774 = vtanh.pop %v772
  %v775 = vmul.f32 %v757, %v773
  %v776 = vmul.f32 %v758, %v774
  %779 = vrot.lane.b32.xlu0 %v775, 96
  %v780 = vpop.permute.xlu0 %779
  %781 = vrot.lane.b32.xlu0 %v776, 96
  %v782 = vpop.permute.xlu0 %781
  %s785 = scalar_lea.vmem %s4, 32
  %786 = vst.msk [vmem:[%s785] sm:$0xff] %vm75, %v780
  %787 = vst.msk [vmem:[%s785 + $0x8] sm:$0xff] %vm75, %v782
  %788 = vmatprep.subr.mxu0 0.0
  %789 = vmatpush1.msra.mxu0 %v780
  %790 = vmatprep.subr.mxu0 0.0
  %791 = vmatpush1.msra.mxu0 %v782
  %792 = vmatprep.subr.mxu0 0.0
  %793 = vmatpush1.msra.mxu0 0.0
  %794 = vmatprep.subr.mxu0 0.0
  %795 = vmatpush1.msra.mxu0 0.0
  %796 = vmatprep.subr.mxu0 0.0
  %797 = vmatpush1.msra.mxu0 0.0
  %798 = vmatprep.subr.mxu0 0.0
  %799 = vmatpush1.msra.mxu0 0.0
  %800 = vmatprep.subr.mxu0 0.0
  %801 = vmatpush1.msra.mxu0 0.0
  %802 = vmatprep.subr.mxu0 0.0
  %803 = vmatpush1.msra.mxu0 0.0
  %804 = vmatprep.subr.mxu0 0.0
  %805 = vmatpush1.msra.mxu0 0.0
  %806 = vmatprep.subr.mxu0 0.0
  %807 = vmatpush1.msra.mxu0 0.0
  %808 = vmatprep.subr.mxu0 0.0
  %809 = vmatpush1.msra.mxu0 0.0
  %810 = vmatprep.subr.mxu0 0.0
  %811 = vmatpush1.msra.mxu0 0.0
  %812 = vmatprep.subr.mxu0 0.0
  %813 = vmatpush1.msra.mxu0 0.0
  %814 = vmatprep.subr.mxu0 0.0
  %815 = vmatpush1.msra.mxu0 0.0
  %816 = vmatprep.subr.mxu0 0.0
  %817 = vmatpush1.msra.mxu0 0.0
  %818 = vmatprep.subr.mxu0 0.0
  %819 = vmatpush1.msra.mxu0 0.0
  %820 = vmatprep.subr.mxu0 0.0
  %821 = vmatpush1.msra.mxu0 0.0
  %822 = vmatprep.subr.mxu0 0.0
  %823 = vmatpush1.msra.mxu0 0.0
  %824 = vmatprep.subr.mxu0 0.0
  %825 = vmatpush1.msra.mxu0 0.0
  %826 = vmatprep.subr.mxu0 0.0
  %827 = vmatpush1.msra.mxu0 0.0
  %828 = vmatprep.subr.mxu0 0.0
  %829 = vmatpush1.msra.mxu0 0.0
  %830 = vmatprep.subr.mxu0 0.0
  %831 = vmatpush1.msra.mxu0 0.0
  %832 = vmatprep.subr.mxu0 0.0
  %833 = vmatpush1.msra.mxu0 0.0
  %834 = vmatprep.subr.mxu0 0.0
  %835 = vmatpush1.msra.mxu0 0.0
  %836 = vmatprep.subr.mxu0 0.0
  %837 = vmatpush1.msra.mxu0 0.0
  %838 = vmatprep.subr.mxu0 0.0
  %839 = vmatpush1.msra.mxu0 0.0
  %840 = vmatprep.subr.mxu0 0.0
  %841 = vmatpush1.msra.mxu0 0.0
  %842 = vmatprep.subr.mxu0 0.0
  %843 = vmatpush1.msra.mxu0 0.0
  %844 = vmatprep.subr.mxu0 0.0
  %845 = vmatpush1.msra.mxu0 0.0
  %846 = vmatprep.subr.mxu0 0.0
  %847 = vmatpush1.msra.mxu0 0.0
  %848 = vmatprep.subr.mxu0 0.0
  %849 = vmatpush1.msra.mxu0 0.0
  %850 = vmatprep.subr.mxu0 0.0
  %851 = vmatpush1.msra.mxu0 0.0
  %852 = vmatprep.mubr.f32.mxu0 0.0
  %853 = vmatmul.mubr.f32.gmra.mrb[0].mxu0 %v214
  %v854 = vpop.f32.mrb[0].mxu0
  %v855 = vadd.f32 0.0, %v854
  %v856 = vpop.f32.mrb[0].mxu0
  %857 = vmatprep.mubr.f32.mxu0 0.0
  %858 = vmatmul.mubr.f32.gmra.mrb[0].mxu0 %v217
  %v859 = vpop.f32.mrb[0].mxu0
  %v860 = vadd.f32 0.0, %v859
  %v861 = vpop.f32.mrb[0].mxu0
  %862 = vmatprep.mubr.f32.mxu0 0.0
  %863 = vmatmul.mubr.f32.gmra.mrb[0].mxu0 %v220
  %v864 = vpop.f32.mrb[0].mxu0
  %v865 = vadd.f32 0.0, %v864
  %v866 = vpop.f32.mrb[0].mxu0
  %867 = vmatprep.mubr.f32.mxu0 0.0
  %868 = vmatmul.mubr.f32.gmra.mrb[0].mxu0 %v223
  %v869 = vpop.f32.mrb[0].mxu0
  %v870 = vadd.f32 0.0, %v869
  %v871 = vpop.f32.mrb[0].mxu0
  %872 = vmatprep.mubr.f32.mxu0 0.0
  %873 = vmatmul.mubr.f32.gmra.mrb[0].mxu0 %v226
  %v874 = vpop.f32.mrb[0].mxu0
  %v875 = vadd.f32 0.0, %v874
  %v876 = vpop.f32.mrb[0].mxu0
  %877 = vmatprep.mubr.f32.mxu0 0.0
  %878 = vmatmul.mubr.f32.gmra.mrb[0].mxu0 %v229
  %v879 = vpop.f32.mrb[0].mxu0
  %v880 = vadd.f32 0.0, %v879
  %v881 = vpop.f32.mrb[0].mxu0
  %882 = vmatprep.mubr.f32.mxu0 0.0
  %883 = vmatmul.mubr.f32.gmra.mrb[0].mxu0 %v232
  %v884 = vpop.f32.mrb[0].mxu0
  %v885 = vadd.f32 0.0, %v884
  %v886 = vpop.f32.mrb[0].mxu0
  %887 = vmatprep.mubr.f32.mxu0 0.0
  %888 = vmatmul.mubr.f32.gmra.mrb[0].mxu0 %v235
  %v889 = vpop.f32.mrb[0].mxu0
  %v890 = vadd.f32 0.0, %v889
  %v891 = vpop.f32.mrb[0].mxu0
  %892 = vdwg.mxu0
  %901 = vrot.lane.b32.xlu0 %v855, 48
  %v902 = vpop.permute.xlu0 %901
  %903 = vrot.lane.b32.xlu0 %v860, 48
  %v904 = vpop.permute.xlu0 %903
  %905 = vrot.lane.b32.xlu0 %v865, 48
  %v906 = vpop.permute.xlu0 %905
  %907 = vrot.lane.b32.xlu0 %v870, 48
  %v908 = vpop.permute.xlu0 %907
  %909 = vrot.lane.b32.xlu0 %v875, 48
  %v910 = vpop.permute.xlu0 %909
  %911 = vrot.lane.b32.xlu0 %v880, 48
  %v912 = vpop.permute.xlu0 %911
  %913 = vrot.lane.b32.xlu0 %v885, 48
  %v914 = vpop.permute.xlu0 %913
  %915 = vrot.lane.b32.xlu0 %v890, 48
  %v916 = vpop.permute.xlu0 %915
  %v925 = vadd.f32 %v167, %v902
  %v926 = vadd.f32 %v172, %v904
  %v927 = vadd.f32 %v177, %v906
  %v928 = vadd.f32 %v182, %v908
  %v929 = vadd.f32 %v187, %v910
  %v930 = vadd.f32 %v192, %v912
  %v931 = vadd.f32 %v197, %v914
  %v932 = vadd.f32 %v202, %v916
  %v933 = vmul.f32 %v925, 0.5
  %v934 = vmul.f32 %v926, 0.5
  %v935 = vtanh.pop %v933
  %v936 = vtanh.pop %v934
  %v937 = vmul.f32 %v935, 0.5
  %v938 = vmul.f32 %v936, 0.5
  %v939 = vadd.f32 %v937, 0.5
  %v940 = vadd.f32 %v938, 0.5
  %v941 = vmul.f32 %v927, 0.5
  %v942 = vmul.f32 %v928, 0.5
  %v943 = vtanh.pop %v941
  %v944 = vtanh.pop %v942
  %v945 = vmul.f32 %v943, 0.5
  %v946 = vmul.f32 %v944, 0.5
  %v947 = vadd.f32 %v945, 0.5
  %v948 = vadd.f32 %v946, 0.5
  %v949 = vtanh.pop %v929
  %v950 = vtanh.pop %v930
  %v951 = vmul.f32 %v931, 0.5
  %v952 = vmul.f32 %v932, 0.5
  %v953 = vtanh.pop %v951
  %v954 = vtanh.pop %v952
  %v955 = vmul.f32 %v953, 0.5
  %v956 = vmul.f32 %v954, 0.5
  %v957 = vadd.f32 %v955, 0.5
  %v958 = vadd.f32 %v956, 0.5
  %961 = vrot.lane.b32.xlu0 %v771, 16
  %v962 = vpop.permute.xlu0 %961
  %963 = vrot.lane.b32.xlu0 %v772, 16
  %v964 = vpop.permute.xlu0 %963
  %v967 = vmul.f32 %v947, %v962
  %v968 = vmul.f32 %v948, %v964
  %v969 = vmul.f32 %v939, %v949
  %v970 = vmul.f32 %v940, %v950
  %v971 = vadd.f32 %v967, %v969
  %v972 = vadd.f32 %v968, %v970
  %v973 = vtanh.pop %v971
  %v974 = vtanh.pop %v972
  %v975 = vmul.f32 %v957, %v973
  %v976 = vmul.f32 %v958, %v974
  %979 = vrot.lane.b32.xlu0 %v975, 80
  %v980 = vpop.permute.xlu0 %979
  %981 = vrot.lane.b32.xlu0 %v976, 80
  %v982 = vpop.permute.xlu0 %981
  %s985 = scalar_lea.vmem %s4, 48
  %986 = vst.msk [vmem:[%s985] sm:$0xff] %vm75, %v980
  %987 = vst.msk [vmem:[%s985 + $0x8] sm:$0xff] %vm75, %v982
  // Predicated region
  $region18: #{temporal_imputer_forward.1} parent=0 // pred_check
    _
  $region19: #{temporal_imputer_forward.1} parent=0 // pred_check_branch
    %989 = sbr.rel (0) target = $region21
  $region20: #{temporal_imputer_forward.1} parent=0 // pred_region
    _
  $region21: #{temporal_imputer_forward.1} parent=0 // pred_fallthru
    _
  // Predicated region
  $region22: #{temporal_imputer_forward.1} parent=0 // pred_check
    _
  $region23: #{temporal_imputer_forward.1} parent=0 // pred_check_branch
    %991 = sbr.rel (0) target = $region25
  $region24: #{temporal_imputer_forward.1} parent=0 // pred_region
    _
  $region25: #{temporal_imputer_forward.1} parent=0 // pred_fallthru
    _

</llo_original>
